<compile_context>
chip_gen: v7x
topology: tpu7x:2x2x1
jax: 0.10.0
libtpu: 0.0.40
codegen_flags: <defaults>
</compile_context>

<pallas_src>
import functools

import jax
import jax.numpy as jnp
import numpy as np
from jax.experimental import pallas as pl
from jax.experimental.pallas import tpu as pltpu

_LANE = 128
_SUB = 8


def _round_up(x, m):
    return -(-x // m) * m


def _ce_partial_kernel(w_sref, p_ref, l_ref, out_ref, *, n_classes,
                       ignore_index, tsub, s_total, needs_tail_mask,
                       has_weight):
    """Per-tile partial sums of the weighted / masked cross-entropy.

    w_sref : SMEM (C,) f32 class weights (scalar prefetch; unused if !has_weight)
    p_ref  : VMEM (1, C, tsub, 128) logits tile of one batch element
    l_ref  : VMEM (1, tsub, 128)    integer class labels
    out_ref: VMEM (1, 1, 2, 128)    row0 = sum(valid * w[label] * nll)
                                    row1 = sum(valid * w[label])
    """
    labels = l_ref[0].astype(jnp.int32)                       # (T, 128)

    # ---- pass 1: running max over classes (no (C,T,128) temporaries) ----
    m = p_ref[0, 0].astype(jnp.float32)                       # (T, 128)
    for c in range(1, n_classes):
        m = jnp.maximum(m, p_ref[0, c].astype(jnp.float32))

    # ---- pass 2: exp-sum + compare/select gather of the label's logit ----
    # (unrolled over classes: targets segmentation-scale C, not LM vocab)
    s_exp = jnp.zeros_like(m)
    picked = jnp.zeros_like(m)
    wpix = jnp.zeros_like(m) if has_weight else None
    for c in range(n_classes):
        x_c = p_ref[0, c].astype(jnp.float32)
        s_exp = s_exp + jnp.exp(x_c - m)                       # EUP slot
        eq = labels == c
        picked = jnp.where(eq, x_c, picked)
        if has_weight:
            wpix = jnp.where(eq, w_sref[c], wpix)              # scalar from SMEM

    nll = (m + jnp.log(s_exp)) - picked                        # -log softmax[label]

    # ---- validity: ignore_index + ragged spatial tail (global pixel index) ----
    valid = labels != ignore_index
    if needs_tail_mask:
        row_ids = jax.lax.broadcasted_iota(jnp.int32, m.shape, 0)
        lane_ids = jax.lax.broadcasted_iota(jnp.int32, m.shape, 1)
        pix = (pl.program_id(1) * tsub + row_ids) * _LANE + lane_ids
        valid = jnp.logical_and(valid, pix < s_total)

    if has_weight:
        vw = jnp.where(valid, wpix, 0.0)
    else:
        vw = valid.astype(jnp.float32)
    # where() before the multiply keeps NaN/Inf from garbage tail rows out
    contrib = vw * jnp.where(valid, nll, 0.0)

    out_ref[0, 0, 0:1, :] = jnp.sum(contrib, axis=0, keepdims=True)
    out_ref[0, 0, 1:2, :] = jnp.sum(vw, axis=0, keepdims=True)


def focal_loss(preds, labels, alpha=0.5, gamma=2.0, weight=None, ignore_index=255):
    """FocalLoss.forward: preds (N, C, *spatial) logits, labels (N, *spatial) int."""
    N, C = int(preds.shape[0]), int(preds.shape[1])
    S = int(np.prod(preds.shape[2:])) if preds.ndim > 2 else 1

    pr = preds.reshape(N, C, S)                                # dtype passed through (f32/bf16)
    lb = labels.reshape(N, S)
    if not jnp.issubdtype(lb.dtype, jnp.integer):
        lb = lb.astype(jnp.int32)

    # Minimum row multiple so VMEM blocks stay native-tiled for packed dtypes.
    pr_item = min(4, pr.dtype.itemsize)
    lb_item = min(4, lb.dtype.itemsize)
    sub_mult = _SUB * (4 // min(pr_item, lb_item))             # 8 / 16 / 32 rows

    # Spatial view: (rows, 128) lanes.  Pad only to the next 128-lane multiple
    # (and up to one minimal block for tiny inputs) — NOT to tile multiples.
    rows = _round_up(S, _LANE) // _LANE
    rows_arr = rows if rows >= sub_mult else sub_mult
    Sp = rows_arr * _LANE
    if Sp != S:
        pr = jnp.pad(pr, ((0, 0), (0, 0), (0, Sp - S)))
        lb = jnp.pad(lb, ((0, 0), (0, Sp - S)))                # values masked by index

    pr4 = pr.reshape(N, C, rows_arr, _LANE)
    lb3 = lb.reshape(N, rows_arr, _LANE)

    # Tile rows: ~4 MiB of logits per pipeline buffer, block never larger than
    # the array's row extent (the last block may still be partial -> masked).
    budget_bytes = 4 * 1024 * 1024
    bytes_per_row = max(1, C * _LANE * pr.dtype.itemsize)
    tsub = (budget_bytes // bytes_per_row // sub_mult) * sub_mult
    tsub = max(sub_mult, min(2048, tsub))
    tsub = min(tsub, (rows_arr // sub_mult) * sub_mult)
    n_s = pl.cdiv(rows_arr, tsub)
    needs_tail = (n_s * tsub * _LANE) != S

    has_weight = weight is not None
    if has_weight:
        w_vec = jnp.asarray(weight, jnp.float32).reshape(C)
    else:
        w_vec = jnp.zeros((1,), jnp.int32)                     # unused dummy prefetch arg

    kernel = functools.partial(
        _ce_partial_kernel, n_classes=C, ignore_index=int(ignore_index),
        tsub=tsub, s_total=S, needs_tail_mask=needs_tail, has_weight=has_weight)

    grid_spec = pltpu.PrefetchScalarGridSpec(
        num_scalar_prefetch=1,
        grid=(N, n_s),
        in_specs=[
            pl.BlockSpec((1, C, tsub, _LANE), lambda n, s, w: (n, 0, s, 0)),
            pl.BlockSpec((1, tsub, _LANE), lambda n, s, w: (n, s, 0)),
        ],
        out_specs=pl.BlockSpec((1, 1, 2, _LANE), lambda n, s, w: (n, s, 0, 0)),
    )
    partial = pl.pallas_call(
        kernel,
        out_shape=jax.ShapeDtypeStruct((N, n_s, 2, _LANE), jnp.float32),
        grid_spec=grid_spec,
        compiler_params=pltpu.CompilerParams(
            dimension_semantics=("parallel", "parallel"),
            vmem_limit_bytes=32 * 1024 * 1024,
        ),
    )(w_vec, pr4, lb3)

    loss_sum = jnp.sum(partial[:, :, 0, :])
    w_sum = jnp.sum(partial[:, :, 1, :])
    ce = loss_sum / w_sum                      # CrossEntropyLoss, 'mean' reduction
    logpt = -ce
    pt = jnp.exp(logpt)
    return -((1.0 - pt) ** gamma) * alpha * logpt


def _reference(preds, labels, alpha=0.5, gamma=2.0, weight=None, ignore_index=255):
    # pure-JAX reference of the PyTorch module for sanity checking
    N, C = preds.shape[0], preds.shape[1]
    logits = preds.reshape(N, C, -1).astype(jnp.float32)
    lab = labels.reshape(N, -1).astype(jnp.int32)
    logp = jax.nn.log_softmax(logits, axis=1)
    valid = lab != ignore_index
    lab_safe = jnp.where(valid, lab, 0)
    picked = jnp.take_along_axis(logp, lab_safe[:, None, :], axis=1)[:, 0, :]
    w = jnp.ones((C,), jnp.float32) if weight is None else jnp.asarray(weight, jnp.float32)
    w_pix = jnp.where(valid, w[lab_safe], 0.0)
    ce = -jnp.sum(w_pix * picked) / jnp.sum(w_pix)
    logpt = -ce
    pt = jnp.exp(logpt)
    return -((1.0 - pt) ** gamma) * alpha * logpt


if __name__ == "__main__":
    key = jax.random.PRNGKey(0)
    k1, k2, k3, k4 = jax.random.split(key, 4)

    # case 1: small spatial map (S=256 -> one minimal 8x128 block, tail masked)
    N, C, H, W = 2, 4, 16, 16
    preds = jax.random.normal(k1, (N, C, H, W), dtype=jnp.float32)
    labels = jax.random.randint(k2, (N, H, W), 0, C, dtype=jnp.int32)
    labels = labels.at[0, :2, :3].set(255)                     # exercise ignore_index

    out = jax.block_until_ready(focal_loss(preds, labels))
    ref = _reference(preds, labels)
    np.testing.assert_allclose(np.asarray(out), np.asarray(ref), rtol=1e-4, atol=1e-6)

    # with a class-weight vector (exercises the SMEM scalar-prefetch weights)
    wvec = jnp.array([0.5, 1.0, 1.5, 2.0], dtype=jnp.float32)
    out_w = jax.block_until_ready(focal_loss(preds, labels, weight=wvec))
    ref_w = _reference(preds, labels, weight=wvec)
    np.testing.assert_allclose(np.asarray(out_w), np.asarray(ref_w), rtol=1e-4, atol=1e-6)

    # case 2: pad-free path with a ragged row tile (rows=18, tsub=16 -> the
    # last spatial block is partial and masked in-kernel by global pixel index)
    N2, C2, H2, W2 = 2, 6, 48, 48
    preds2 = jax.random.normal(k3, (N2, C2, H2, W2), dtype=jnp.float32)
    labels2 = jax.random.randint(k4, (N2, H2, W2), 0, C2, dtype=jnp.int32)
    labels2 = labels2.at[1, 5:9, :].set(255)

    out2 = jax.block_until_ready(focal_loss(preds2, labels2))
    ref2 = _reference(preds2, labels2)
    np.testing.assert_allclose(np.asarray(out2), np.asarray(ref2), rtol=1e-4, atol=1e-6)

    print("KERNEL_OK")
</pallas_src>

<mosaic_0001>
module attributes {stable_mosaic.version = 11 : i64} {
  func.func @_ce_partial_kernel(%arg0: i32, %arg1: i32, %arg2: memref<1xi32, #tpu.memory_space<smem>>, %arg3: memref<1x4x8x128xf32, #tpu.memory_space<vmem>>, %arg4: memref<1x8x128xi32, #tpu.memory_space<vmem>>, %arg5: memref<1x1x2x128xf32, #tpu.memory_space<vmem>>) attributes {dimension_semantics = [#tpu.dimension_semantics<parallel>, #tpu.dimension_semantics<parallel>], iteration_bounds = array<i64: 2, 1>, scalar_prefetch = 1 : i64, scratch_operands = 0 : i64, tpu.core_type = #tpu.core_type<tc>, window_params = [{transform_indices = @transform_0, window_bounds = array<i64: 1, 4, 8, 128>}, {transform_indices = @transform_1, window_bounds = array<i64: 1, 8, 128>}, {transform_indices = @transform_2, window_bounds = array<i64: 1, 1, 2, 128>}]} {
    %c0 = arith.constant 0 : index
    %c0_0 = arith.constant 0 : index
    %c0_1 = arith.constant 0 : index
    %0 = vector.load %arg4[%c0, %c0_0, %c0_1] : memref<1x8x128xi32, #tpu.memory_space<vmem>>, vector<1x8x128xi32>
    %1 = vector.shape_cast %0 : vector<1x8x128xi32> to vector<8x128xi32>
    %c0_2 = arith.constant 0 : index
    %c0_3 = arith.constant 0 : index
    %c0_4 = arith.constant 0 : index
    %c0_5 = arith.constant 0 : index
    %2 = vector.load %arg3[%c0_2, %c0_3, %c0_4, %c0_5] : memref<1x4x8x128xf32, #tpu.memory_space<vmem>>, vector<1x1x8x128xf32>
    %3 = vector.shape_cast %2 : vector<1x1x8x128xf32> to vector<8x128xf32>
    %c0_6 = arith.constant 0 : index
    %c1 = arith.constant 1 : index
    %c0_7 = arith.constant 0 : index
    %c0_8 = arith.constant 0 : index
    %4 = vector.load %arg3[%c0_6, %c1, %c0_7, %c0_8] : memref<1x4x8x128xf32, #tpu.memory_space<vmem>>, vector<1x1x8x128xf32>
    %5 = vector.shape_cast %4 : vector<1x1x8x128xf32> to vector<8x128xf32>
    %6 = arith.maximumf %3, %5 : vector<8x128xf32>
    %c0_9 = arith.constant 0 : index
    %c2 = arith.constant 2 : index
    %c0_10 = arith.constant 0 : index
    %c0_11 = arith.constant 0 : index
    %7 = vector.load %arg3[%c0_9, %c2, %c0_10, %c0_11] : memref<1x4x8x128xf32, #tpu.memory_space<vmem>>, vector<1x1x8x128xf32>
    %8 = vector.shape_cast %7 : vector<1x1x8x128xf32> to vector<8x128xf32>
    %9 = arith.maximumf %6, %8 : vector<8x128xf32>
    %c0_12 = arith.constant 0 : index
    %c3 = arith.constant 3 : index
    %c0_13 = arith.constant 0 : index
    %c0_14 = arith.constant 0 : index
    %10 = vector.load %arg3[%c0_12, %c3, %c0_13, %c0_14] : memref<1x4x8x128xf32, #tpu.memory_space<vmem>>, vector<1x1x8x128xf32>
    %11 = vector.shape_cast %10 : vector<1x1x8x128xf32> to vector<8x128xf32>
    %12 = arith.maximumf %9, %11 : vector<8x128xf32>
    %cst = arith.constant 0.000000e+00 : f32
    %13 = vector.broadcast %cst : f32 to vector<8x128xf32>
    %cst_15 = arith.constant 0.000000e+00 : f32
    %14 = vector.broadcast %cst_15 : f32 to vector<8x128xf32>
    %c0_16 = arith.constant 0 : index
    %c0_17 = arith.constant 0 : index
    %c0_18 = arith.constant 0 : index
    %c0_19 = arith.constant 0 : index
    %15 = vector.load %arg3[%c0_16, %c0_17, %c0_18, %c0_19] : memref<1x4x8x128xf32, #tpu.memory_space<vmem>>, vector<1x1x8x128xf32>
    %16 = vector.shape_cast %15 : vector<1x1x8x128xf32> to vector<8x128xf32>
    %17 = arith.subf %16, %12 : vector<8x128xf32>
    %18 = math.exp %17 : vector<8x128xf32>
    %19 = arith.addf %13, %18 : vector<8x128xf32>
    %c0_i32 = arith.constant 0 : i32
    %20 = vector.broadcast %c0_i32 : i32 to vector<8x128xi32>
    %21 = arith.cmpi eq, %1, %20 : vector<8x128xi32>
    %22 = arith.select %21, %16, %14 : vector<8x128xi1>, vector<8x128xf32>
    %c0_20 = arith.constant 0 : index
    %c1_21 = arith.constant 1 : index
    %c0_22 = arith.constant 0 : index
    %c0_23 = arith.constant 0 : index
    %23 = vector.load %arg3[%c0_20, %c1_21, %c0_22, %c0_23] : memref<1x4x8x128xf32, #tpu.memory_space<vmem>>, vector<1x1x8x128xf32>
    %24 = vector.shape_cast %23 : vector<1x1x8x128xf32> to vector<8x128xf32>
    %25 = arith.subf %24, %12 : vector<8x128xf32>
    %26 = math.exp %25 : vector<8x128xf32>
    %27 = arith.addf %19, %26 : vector<8x128xf32>
    %c1_i32 = arith.constant 1 : i32
    %28 = vector.broadcast %c1_i32 : i32 to vector<8x128xi32>
    %29 = arith.cmpi eq, %1, %28 : vector<8x128xi32>
    %30 = arith.select %29, %24, %22 : vector<8x128xi1>, vector<8x128xf32>
    %c0_24 = arith.constant 0 : index
    %c2_25 = arith.constant 2 : index
    %c0_26 = arith.constant 0 : index
    %c0_27 = arith.constant 0 : index
    %31 = vector.load %arg3[%c0_24, %c2_25, %c0_26, %c0_27] : memref<1x4x8x128xf32, #tpu.memory_space<vmem>>, vector<1x1x8x128xf32>
    %32 = vector.shape_cast %31 : vector<1x1x8x128xf32> to vector<8x128xf32>
    %33 = arith.subf %32, %12 : vector<8x128xf32>
    %34 = math.exp %33 : vector<8x128xf32>
    %35 = arith.addf %27, %34 : vector<8x128xf32>
    %c2_i32 = arith.constant 2 : i32
    %36 = vector.broadcast %c2_i32 : i32 to vector<8x128xi32>
    %37 = arith.cmpi eq, %1, %36 : vector<8x128xi32>
    %38 = arith.select %37, %32, %30 : vector<8x128xi1>, vector<8x128xf32>
    %c0_28 = arith.constant 0 : index
    %c3_29 = arith.constant 3 : index
    %c0_30 = arith.constant 0 : index
    %c0_31 = arith.constant 0 : index
    %39 = vector.load %arg3[%c0_28, %c3_29, %c0_30, %c0_31] : memref<1x4x8x128xf32, #tpu.memory_space<vmem>>, vector<1x1x8x128xf32>
    %40 = vector.shape_cast %39 : vector<1x1x8x128xf32> to vector<8x128xf32>
    %41 = arith.subf %40, %12 : vector<8x128xf32>
    %42 = math.exp %41 : vector<8x128xf32>
    %43 = arith.addf %35, %42 : vector<8x128xf32>
    %c3_i32 = arith.constant 3 : i32
    %44 = vector.broadcast %c3_i32 : i32 to vector<8x128xi32>
    %45 = arith.cmpi eq, %1, %44 : vector<8x128xi32>
    %46 = arith.select %45, %40, %38 : vector<8x128xi1>, vector<8x128xf32>
    %47 = math.log %43 : vector<8x128xf32>
    %48 = arith.addf %12, %47 : vector<8x128xf32>
    %49 = arith.subf %48, %46 : vector<8x128xf32>
    %c255_i32 = arith.constant 255 : i32
    %50 = vector.broadcast %c255_i32 : i32 to vector<8x128xi32>
    %51 = arith.cmpi ne, %1, %50 : vector<8x128xi32>
    %52 = tpu.iota {dimensions = array<i32: 0>} : vector<8x128xi32>
    %53 = tpu.iota {dimensions = array<i32: 1>} : vector<8x128xi32>
    %c8_i32 = arith.constant 8 : i32
    %54 = arith.muli %arg1, %c8_i32 : i32
    %55 = vector.broadcast %54 : i32 to vector<8x128xi32>
    %56 = arith.addi %55, %52 : vector<8x128xi32>
    %c128_i32 = arith.constant 128 : i32
    %57 = vector.broadcast %c128_i32 : i32 to vector<8x128xi32>
    %58 = arith.muli %56, %57 : vector<8x128xi32>
    %59 = arith.addi %58, %53 : vector<8x128xi32>
    %c256_i32 = arith.constant 256 : i32
    %60 = vector.broadcast %c256_i32 : i32 to vector<8x128xi32>
    %61 = arith.cmpi slt, %59, %60 : vector<8x128xi32>
    %62 = arith.andi %51, %61 : vector<8x128xi1>
    %63 = arith.extui %62 : vector<8x128xi1> to vector<8x128xi32>
    %64 = arith.sitofp %63 : vector<8x128xi32> to vector<8x128xf32>
    %cst_32 = arith.constant 0.000000e+00 : f32
    %65 = vector.broadcast %cst_32 : f32 to vector<8x128xf32>
    %66 = arith.select %62, %49, %65 : vector<8x128xi1>, vector<8x128xf32>
    %67 = arith.mulf %64, %66 : vector<8x128xf32>
    %cst_33 = arith.constant dense<0.000000e+00> : vector<128xf32>
    %68 = vector.multi_reduction <add>, %67, %cst_33 [0] : vector<8x128xf32> to vector<128xf32>
    %69 = vector.shape_cast %68 : vector<128xf32> to vector<1x128xf32>
    %c0_34 = arith.constant 0 : index
    %c0_35 = arith.constant 0 : index
    %c0_36 = arith.constant 0 : index
    %c0_37 = arith.constant 0 : index
    %70 = vector.load %arg5[%c0_34, %c0_35, %c0_36, %c0_37] : memref<1x1x2x128xf32, #tpu.memory_space<vmem>>, vector<1x1x1x128xf32>
    %71 = vector.shape_cast %70 : vector<1x1x1x128xf32> to vector<1x128xf32>
    %72 = vector.shape_cast %69 : vector<1x128xf32> to vector<1x1x1x128xf32>
    tpu.vector_store %arg5[%c0_34, %c0_35, %c0_36, %c0_37], %72 {strides = array<i32>} : memref<1x1x2x128xf32, #tpu.memory_space<vmem>>, vector<1x1x1x128xf32>,
    %cst_38 = arith.constant dense<0.000000e+00> : vector<128xf32>
    %73 = vector.multi_reduction <add>, %64, %cst_38 [0] : vector<8x128xf32> to vector<128xf32>
    %74 = vector.shape_cast %73 : vector<128xf32> to vector<1x128xf32>
    %c0_39 = arith.constant 0 : index
    %c0_40 = arith.constant 0 : index
    %c1_41 = arith.constant 1 : index
    %c0_42 = arith.constant 0 : index
    %75 = vector.load %arg5[%c0_39, %c0_40, %c1_41, %c0_42] : memref<1x1x2x128xf32, #tpu.memory_space<vmem>>, vector<1x1x1x128xf32>
    %76 = vector.shape_cast %75 : vector<1x1x1x128xf32> to vector<1x128xf32>
    %77 = vector.shape_cast %74 : vector<1x128xf32> to vector<1x1x1x128xf32>
    tpu.vector_store %arg5[%c0_39, %c0_40, %c1_41, %c0_42], %77 {strides = array<i32>} : memref<1x1x2x128xf32, #tpu.memory_space<vmem>>, vector<1x1x1x128xf32>,
    return
  }
  func.func @transform_0(%arg0: i32, %arg1: i32, %arg2: memref<1xi32, #tpu.memory_space<smem>>) -> (i32, i32, i32, i32) {
    %c0_i32 = arith.constant 0 : i32
    %c0_i32_0 = arith.constant 0 : i32
    %c0_i32_1 = arith.constant 0 : i32
    return %arg0, %c0_i32, %arg1, %c0_i32_0 : i32, i32, i32, i32
  }
  func.func @transform_1(%arg0: i32, %arg1: i32, %arg2: memref<1xi32, #tpu.memory_space<smem>>) -> (i32, i32, i32) {
    %c0_i32 = arith.constant 0 : i32
    %c0_i32_0 = arith.constant 0 : i32
    return %arg0, %arg1, %c0_i32 : i32, i32, i32
  }
  func.func @transform_2(%arg0: i32, %arg1: i32, %arg2: memref<1xi32, #tpu.memory_space<smem>>) -> (i32, i32, i32, i32) {
    %c0_i32 = arith.constant 0 : i32
    %c0_i32_0 = arith.constant 0 : i32
    %c0_i32_1 = arith.constant 0 : i32
    return %arg0, %arg1, %c0_i32, %c0_i32_0 : i32, i32, i32, i32
  }
}

</mosaic_0001>

<llo_original>
// kernel: tpu_custom_call.1
$region0: #{tpu_custom_call.1}
  #allocation0 [shape = 'u32[]', space=smem, size = 0x4, offset = 0x4, fixed_abs, tag = 'smem constant byte address 0x4 - core index']
  #allocation1 [shape = 'u32[144,128]{1,0:T(1,128)}', space=vmem, size = 0x12000, scoped, tag = 'internal scratch']
  #allocation2 [shape = 's32[1]{0}', space=sflag, size = 0x4, scoped, tag = 'scoped memory for tpu_custom_call.1']
  #allocation3 [shape = 's32[1]{0:T(128)S(6)}', space=smem, size = 0x200, scoped, tag = 'prefetched SMEM operand 0']
  %s0 = inlined_call_operand.<no memory space> [shape: s32[1], index: 0, kind: input, shape index: {}]
  %s1 = inlined_call_operand.hbm [shape: f32[2,4,8,128], index: 1, kind: input, shape index: {}]
  %s2 = inlined_call_operand.hbm [shape: s32[2,8,128], index: 2, kind: input, shape index: {}]
  %s3 = inlined_call_operand.hbm [shape: f32[2,1,2,128], index: 3, kind: output, shape index: {}]
  %s4 = sld [smem:[#allocation0]]
  $region49: #{tpu_custom_call.1} parent=0
    _
  %s6 = ssub.s32 1, %s4
  %s7 = scalar_select 0, %s6, %s4
  %8 = sst [smem:[#allocation3]] %s0
  $region1: #{tpu_custom_call.1} parent=0
    #allocation4 [shape = 'u8[32768]{0}', space=vmem, size = 0x8000, scoped, tag = 'input window, operand 1']
    #allocation5 [shape = 's32[2]{0}', space=sflag, size = 0x8, scoped, tag = 'scoped memory for tpu_custom_call.1']
    #allocation6 [shape = 's32[2]{0}', space=sflag, size = 0x8, scoped, tag = 'scoped memory for tpu_custom_call.1']
    #allocation7 [shape = 'u8[8192]{0}', space=vmem, size = 0x2000, scoped, tag = 'input window, operand 2']
    #allocation8 [shape = 's32[2]{0}', space=sflag, size = 0x8, scoped, tag = 'scoped memory for tpu_custom_call.1']
    #allocation9 [shape = 'u8[2048]{0}', space=vmem, size = 0x800, scoped, tag = 'output window, operand 0']
    %9 = vsyncpa [#allocation5], 0
    %s10 = scalar_lea.sflag [#allocation5], 1
    %11 = vsyncpa %s10, 0
    %12 = vsyncpa [#allocation8], 0
    %s13 = scalar_lea.sflag [#allocation8], 1
    %14 = vsyncpa %s13, 0
    %15 = vsyncpa [#allocation6], 0
    %s16 = scalar_lea.sflag [#allocation6], 1
    %17 = vsyncpa %s16, 0
    loop: start=0, step=1, limit=4
    $region2: #{tpu_custom_call.1} parent=1 // loop_pre_header
      _
    $region3: #{tpu_custom_call.1} parent=1 // loop_header
      %s19 = sphi 0, %s23
      %p20 = scmp.ge.s32.totalorder %s19, 4
      %s26 = sphi 0, %s38
      %s27 = sphi 0, %s34
      %s28 = sphi 0, %s26
      %s29 = sphi 0, %s27
      %s30 = sphi 0, %s28
      %s31 = sphi 0, %s29
      %s43 = sphi 0, %s45
      %s46 = sphi 0, %s43
      %s47 = sphi 0, %s46
      %s63 = sphi 0, %s47
      %s71 = sphi 0, %s73
      %s74 = sphi 0, %s71
      %s75 = sphi 0, %s74
      %s91 = sphi 0, %s75
      %s99 = sphi 0, %s101
      %s102 = sphi 0, %s99
      %s103 = sphi 0, %s102
      %s119 = sphi 0, %s103
    $region4: #{tpu_custom_call.1} parent=1 // loop_header_branch
      %22 = sbr.rel (%p20) target = $region8
    $region5: #{tpu_custom_call.1} parent=1 // loop_body
      %s24 = ssub.s32 %s19, 1
      %s25 = ssub.s32 %s19, 2
      %s32 = sadd.s32 1, %s27
      %p33 = scmp.ge.s32.totalorder %s32, 1
      %s34 = scalar_select %p33, 0, %s32
      %s35 = sadd.s32 1, %s26
      %s36 = scalar_select %p33, %s35, %s26
      %p37 = scmp.ge.s32.totalorder %s36, 2
      %s38 = scalar_select %p37, 0, %s36
      %s39 = ssub.s32 %s26, %s38
      %s40 = ssub.s32 %s27, %s34
      %s41 = sor.u32 %s39, %s40
      %p42 = scmp.eq.s32.totalorder %s41, 0
      %s44 = sadd.s32 %s43, 1
      %s45 = scalar_select %p42, %s43, %s44
      %p48 = pneg %p42
      %p49 = scmp.eq.s32.totalorder %s19, 1
      %p50 = por %p48, %p49
      %p51 = scmp.ne.s32.totalorder %s43, %s46
      %p52 = scmp.eq.s32.totalorder %s19, 0
      %p53 = por %p51, %p52
      %p54 = scmp.ne.s32.totalorder %s43, %s46
      %p55 = scmp.eq.s32.totalorder %s24, 1
      %p56 = por %p54, %p55
      %p57 = scmp.ne.s32.totalorder %s46, %s47
      %p58 = scmp.eq.s32.totalorder %s24, 0
      %p59 = por %p57, %p58
      %p60 = scmp.ne.s32.totalorder %s46, %s47
      %p61 = scmp.eq.s32.totalorder %s25, 1
      %p62 = por %p60, %p61
      %p64 = scmp.ne.s32.totalorder %s47, %s63
      %p65 = scmp.eq.s32.totalorder %s25, 0
      %p66 = por %p64, %p65
      %s67 = ssub.s32 %s26, %s38
      %s68 = ssub.s32 %s27, %s34
      %s69 = sor.u32 %s67, %s68
      %p70 = scmp.eq.s32.totalorder %s69, 0
      %s72 = sadd.s32 %s71, 1
      %s73 = scalar_select %p70, %s71, %s72
      %p76 = pneg %p70
      %p77 = scmp.eq.s32.totalorder %s19, 1
      %p78 = por %p76, %p77
      %p79 = scmp.ne.s32.totalorder %s71, %s74
      %p80 = scmp.eq.s32.totalorder %s19, 0
      %p81 = por %p79, %p80
      %p82 = scmp.ne.s32.totalorder %s71, %s74
      %p83 = scmp.eq.s32.totalorder %s24, 1
      %p84 = por %p82, %p83
      %p85 = scmp.ne.s32.totalorder %s74, %s75
      %p86 = scmp.eq.s32.totalorder %s24, 0
      %p87 = por %p85, %p86
      %p88 = scmp.ne.s32.totalorder %s74, %s75
      %p89 = scmp.eq.s32.totalorder %s25, 1
      %p90 = por %p88, %p89
      %p92 = scmp.ne.s32.totalorder %s75, %s91
      %p93 = scmp.eq.s32.totalorder %s25, 0
      %p94 = por %p92, %p93
      %s95 = ssub.s32 %s26, %s38
      %s96 = ssub.s32 %s27, %s34
      %s97 = sor.u32 %s95, %s96
      %p98 = scmp.eq.s32.totalorder %s97, 0
      %s100 = sadd.s32 %s99, 1
      %s101 = scalar_select %p98, %s99, %s100
      %p104 = pneg %p98
      %p105 = scmp.eq.s32.totalorder %s19, 1
      %p106 = por %p104, %p105
      %p107 = scmp.ne.s32.totalorder %s99, %s102
      %p108 = scmp.eq.s32.totalorder %s19, 0
      %p109 = por %p107, %p108
      %p110 = scmp.ne.s32.totalorder %s99, %s102
      %p111 = scmp.eq.s32.totalorder %s24, 1
      %p112 = por %p110, %p111
      %p113 = scmp.ne.s32.totalorder %s102, %s103
      %p114 = scmp.eq.s32.totalorder %s24, 0
      %p115 = por %p113, %p114
      %p116 = scmp.ne.s32.totalorder %s102, %s103
      %p117 = scmp.eq.s32.totalorder %s25, 1
      %p118 = por %p116, %p117
      %p120 = scmp.ne.s32.totalorder %s103, %s119
      %p121 = scmp.eq.s32.totalorder %s25, 0
      %p122 = por %p120, %p121
      %p123 = scmp.le.s32.totalorder 1, %s19
      %p124 = scmp.lt.s32.totalorder %s19, 3
      %p125 = pnand %p123, %p124
      %p126 = pneg %p125
      // Predicated region
      $region9: #{tpu_custom_call.1} parent=5 // pred_check
        _
      $region10: #{tpu_custom_call.1} parent=5 // pred_check_branch
        %128 = sbr.rel (%p125) target = $region12
      $region11: #{tpu_custom_call.1} parent=5 // pred_region
        %s129 = ssub.s32 %s19, 1
      $region12: #{tpu_custom_call.1} parent=5 // pred_fallthru
        _
      %p130 = scmp.lt.s32.totalorder %s19, 2
      // Predicated region
      $region13: #{tpu_custom_call.1} parent=5 // pred_check
        %p131 = pneg %p130
      $region14: #{tpu_custom_call.1} parent=5 // pred_check_branch
        %133 = sbr.rel (%p131) target = $region16
      $region15: #{tpu_custom_call.1} parent=5 // pred_region
        // Predicated region
        $region17: #{tpu_custom_call.1} parent=15 // pred_check
          %p134 = pneg %p53
        $region18: #{tpu_custom_call.1} parent=15 // pred_check_branch
          %136 = sbr.rel (%p134) target = $region20
        $region19: #{tpu_custom_call.1} parent=15 // pred_region
          %s137 = sand.u32 %s43, 1
          %s138 = scalar_lea.sflag [#allocation5], %s137
          %s139 = sand.u32 %s43, 1
          %s140 = smul.addr %s139, 32
          %s141 = scalar_lea.vmem [#allocation4], %s140
          %s143 = ssub.s32 512, 512
          %144 = vsyncadd %s138, %s143
          %s145 = smul.addr %s26, 4
          %s146 = sadd.s32 %s27, %s145
          %s147 = smul.addr %s146, 128
          %s148 = scalar_lea.hbm %s1, %s147
          %s149 = sshll.u32 %s141, 4
          %s150 = int_to_ptr.vmem [resolvable:$true] %s149
          %155 = dma.hbm_to_vmem [thread:$0]  %s148, 512, %s150, %s138, 128, 128, 8
        $region20: #{tpu_custom_call.1} parent=15 // pred_fallthru
          _
        // Predicated region
        $region21: #{tpu_custom_call.1} parent=15 // pred_check
          %p156 = pneg %p81
        $region22: #{tpu_custom_call.1} parent=15 // pred_check_branch
          %158 = sbr.rel (%p156) target = $region24
        $region23: #{tpu_custom_call.1} parent=15 // pred_region
          %s159 = sand.u32 %s71, 1
          %s160 = scalar_lea.sflag [#allocation8], %s159
          %s161 = sand.u32 %s71, 1
          %s162 = smul.addr %s161, 8
          %s163 = scalar_lea.vmem [#allocation7], %s162
          %s165 = ssub.s32 128, 128
          %166 = vsyncadd %s160, %s165
          %s167 = sadd.s32 %s27, %s26
          %s168 = smul.addr %s167, 128
          %s169 = scalar_lea.hbm %s2, %s168
          %s171 = sshll.u32 %s163, 4
          %s172 = int_to_ptr.vmem [resolvable:$true] %s171
          %174 = dma.hbm_to_vmem [thread:$0]  %s169, 128, %s172, %s160
        $region24: #{tpu_custom_call.1} parent=15 // pred_fallthru
          _
      $region16: #{tpu_custom_call.1} parent=5 // pred_fallthru
        _
      %p175 = scmp.le.s32.totalorder 1, %s19
      %p176 = scmp.lt.s32.totalorder %s19, 3
      %p177 = pnand %p175, %p176
      %p178 = pneg %p177
      // Predicated region
      $region25: #{tpu_custom_call.1} parent=5 // pred_check
        _
      $region26: #{tpu_custom_call.1} parent=5 // pred_check_branch
        %180 = sbr.rel (%p177) target = $region28
      $region27: #{tpu_custom_call.1} parent=5 // pred_region
        %s181 = ssub.s32 %s19, 1
        %s182 = sand.u32 %s46, 1
        %s183 = scalar_lea.sflag [#allocation5], %s182
        %s184 = sand.u32 %s46, 1
        %s185 = smul.addr %s184, 32
        %s186 = scalar_lea.vmem [#allocation4], %s185
        // Predicated region
        $region29: #{tpu_custom_call.1} parent=27 // pred_check
          %p187 = pneg %p59
        $region30: #{tpu_custom_call.1} parent=27 // pred_check_branch
          %189 = sbr.rel (%p187) target = $region32
        $region31: #{tpu_custom_call.1} parent=27 // pred_region
          %190 = dma.done %s183, 512
        $region32: #{tpu_custom_call.1} parent=27 // pred_fallthru
          _
        %s191 = sand.u32 %s74, 1
        %s192 = scalar_lea.sflag [#allocation8], %s191
        %s193 = sand.u32 %s74, 1
        %s194 = smul.addr %s193, 8
        %s195 = scalar_lea.vmem [#allocation7], %s194
        // Predicated region
        $region33: #{tpu_custom_call.1} parent=27 // pred_check
          %p196 = pneg %p87
        $region34: #{tpu_custom_call.1} parent=27 // pred_check_branch
          %198 = sbr.rel (%p196) target = $region36
        $region35: #{tpu_custom_call.1} parent=27 // pred_region
          %199 = dma.done %s192, 128
        $region36: #{tpu_custom_call.1} parent=27 // pred_fallthru
          _
        %s200 = sand.u32 %s46, 1
        %s201 = scalar_lea.sflag [#allocation5], %s200
        %s202 = sand.u32 %s46, 1
        %s203 = smul.addr %s202, 32
        %s204 = scalar_lea.vmem [#allocation4], %s203
        %p205 = pneg %p59
        %p206 = pneg %p56
        %s207 = sand.u32 %s74, 1
        %s208 = scalar_lea.sflag [#allocation8], %s207
        %s209 = sand.u32 %s74, 1
        %s210 = smul.addr %s209, 8
        %s211 = scalar_lea.vmem [#allocation7], %s210
        %p212 = pneg %p87
        %p213 = pneg %p84
        %p214 = pneg %p115
        %p215 = pneg %p112
        %s216 = sand.u32 %s102, 1
        %s217 = scalar_lea.sflag [#allocation6], %s216
        %s218 = sand.u32 %s102, 1
        %s219 = smul.addr %s218, 2
        %s220 = scalar_lea.vmem [#allocation9], %s219
        %v221 = vld [vmem:[%s195] sm:$0xff]
        %v222 = vld [vmem:[%s186] sm:$0xff]
        %s223 = scalar_lea.vmem %s186, 8 [#allocation4]
        %v224 = vld [vmem:[%s223] sm:$0xff]
        %v225 = vmax.f32 %v222, %v224
        %s226 = scalar_lea.vmem %s186, 16 [#allocation4]
        %v227 = vld [vmem:[%s226] sm:$0xff]
        %v228 = vmax.f32 %v225, %v227
        %s229 = scalar_lea.vmem %s186, 24 [#allocation4]
        %v230 = vld [vmem:[%s229] sm:$0xff]
        %v231 = vmax.f32 %v228, %v230
        %v232 = vsub.f32 %v222, %v231
        %v233 = vmul.f32 %v232, 1.442695
        %v234 = vpow.pop %v233
        %v235 = vadd.f32 %v234, 0.0
        %vm236 = vcmp.eq.s32.totalorder %v221, 0
        %v237 = vsel %vm236, %v222, 0.0
        %v238 = vsub.f32 %v224, %v231
        %v239 = vmul.f32 %v238, 1.442695
        %v240 = vpow.pop %v239
        %v241 = vadd.f32 %v235, %v240
        %vm242 = vcmp.eq.s32.totalorder %v221, 1
        %v243 = vsel %vm242, %v224, %v237
        %v244 = vsub.f32 %v227, %v231
        %v245 = vmul.f32 %v244, 1.442695
        %v246 = vpow.pop %v245
        %v247 = vadd.f32 %v241, %v246
        %vm248 = vcmp.eq.s32.totalorder %v221, 2
        %v249 = vsel %vm248, %v227, %v243
        %v250 = vsub.f32 %v230, %v231
        %v251 = vmul.f32 %v250, 1.442695
        %v252 = vpow.pop %v251
        %v253 = vadd.f32 %v247, %v252
        %vm254 = vcmp.eq.s32.totalorder %v221, 3
        %v255 = vsel %vm254, %v230, %v249
        %v256 = vlog2.pop %v253
        %v257 = vmul.f32 %v256, 0.6931472
        %v258 = vadd.f32 %v231, %v257
        %v259 = vsub.f32 %v258, %v255
        %vm260 = vcmp.ne.s32.totalorder %v221, 255
        %v261 = vlaneseq
        %v262 = vshrl.u32 %v261, 7
        %v263 = vlaneseq
        %v264 = vand.u32 %v263, 127
        %s265 = smul.u32 %s29, 8
        %v266 = vstv %s265
        %v267 = vadd.s32 %v266, %v262
        %v268 = vmul.u32 %v267, 128
        %v269 = vadd.s32 %v268, %v264
        %vm270 = vcmp.lt.s32.totalorder %v269, 256
        %vm271 = vmand %vm260, %vm270
        %v272 = vsel %vm271, 1, 0
        %v273 = vcvt.s32.f32 %v272
        %v274 = vsel %vm271, %v259, 0.0
        %v275 = vmul.f32 %v273, %v274
        %v276 = vrot.slane %v275, 4
        %v277 = vadd.f32 %v275, %v276
        %v278 = vrot.slane %v277, 2
        %v279 = vadd.f32 %v277, %v278
        %v280 = vrot.slane %v279, 1
        %v281 = vadd.f32 %v279, %v280
        %282 = vst [vmem:[%s220] sm:$0x1] %v281
        %v283 = vrot.slane %v273, 4
        %v284 = vadd.f32 %v273, %v283
        %v285 = vrot.slane %v284, 2
        %v286 = vadd.f32 %v284, %v285
        %v287 = vrot.slane %v286, 1
        %v288 = vadd.f32 %v286, %v287
        %289 = vst [vmem:[%s220 + $0x1] sm:$0x1] %v288
        %s290 = sand.u32 %s102, 1
        %s291 = scalar_lea.sflag [#allocation6], %s290
        %s292 = sand.u32 %s102, 1
        %s293 = smul.addr %s292, 2
        %s294 = scalar_lea.vmem [#allocation9], %s293
        // Predicated region
        $region37: #{tpu_custom_call.1} parent=27 // pred_check
          %p295 = pneg %p112
        $region38: #{tpu_custom_call.1} parent=27 // pred_check_branch
          %297 = sbr.rel (%p295) target = $region40
        $region39: #{tpu_custom_call.1} parent=27 // pred_region
          %s299 = ssub.s32 32, 32
          %300 = vsyncadd %s291, %s299
          %s301 = sadd.s32 %s29, %s28
          %s302 = smul.addr %s301, 32
          %s303 = scalar_lea.hbm %s3, %s302
          %s305 = sshll.u32 %s294, 4
          %s306 = int_to_ptr.vmem [resolvable:$true] %s305
          %308 = dma.vmem_to_hbm [thread:$0]  %s306, 32, %s303, %s291
        $region40: #{tpu_custom_call.1} parent=27 // pred_fallthru
          _
      $region28: #{tpu_custom_call.1} parent=5 // pred_fallthru
        _
      %p309 = scmp.le.s32.totalorder 2, %s19
      // Predicated region
      $region41: #{tpu_custom_call.1} parent=5 // pred_check
        %p310 = pneg %p309
      $region42: #{tpu_custom_call.1} parent=5 // pred_check_branch
        %312 = sbr.rel (%p310) target = $region44
      $region43: #{tpu_custom_call.1} parent=5 // pred_region
        %s313 = ssub.s32 %s19, 2
        // Predicated region
        $region45: #{tpu_custom_call.1} parent=43 // pred_check
          %p314 = pneg %p118
        $region46: #{tpu_custom_call.1} parent=43 // pred_check_branch
          %316 = sbr.rel (%p314) target = $region48
        $region47: #{tpu_custom_call.1} parent=43 // pred_region
          %s317 = sand.u32 %s103, 1
          %s318 = scalar_lea.sflag [#allocation6], %s317
          %s319 = sand.u32 %s103, 1
          %s320 = smul.addr %s319, 2
          %s321 = scalar_lea.vmem [#allocation9], %s320
          %322 = dma.done %s318, 32
        $region48: #{tpu_custom_call.1} parent=43 // pred_fallthru
          _
      $region44: #{tpu_custom_call.1} parent=5 // pred_fallthru
        _
    $region6: #{tpu_custom_call.1} parent=1 // loop_footer
      %s23 = sadd.s32 1, %s19
    $region7: #{tpu_custom_call.1} parent=1 // loop_footer_branch
      %18 = sbr.rel target = $region3
    $region8: #{tpu_custom_call.1} parent=1 // loop_exit
      _
    %323 = vsyncpa [#allocation5], 1
    %s324 = scalar_lea.sflag [#allocation5], 1
    %325 = vsyncpa %s324, 1
    %326 = vsyncpa [#allocation8], 1
    %s327 = scalar_lea.sflag [#allocation8], 1
    %328 = vsyncpa %s327, 1
    %329 = vsyncpa [#allocation6], 1
    %s330 = scalar_lea.sflag [#allocation6], 1
    %331 = vsyncpa %s330, 1

</llo_original>
